<compile_context>
chip_gen: v7x
topology: tpu7x:2x2x1
jax: 0.10.0
libtpu: 0.0.40
codegen_flags: <defaults>
</compile_context>

<pallas_src>
import functools

import jax
import jax.numpy as jnp
from jax.experimental import pallas as pl
from jax.experimental.pallas import tpu as pltpu

EPS = 1e-5
NEG_INF = -1e30                      # finite mask sentinel (scores stay f32)


def _vmem_limit_bytes() -> int:
    """~75% of physical VMEM: 96 MiB on v5e/v6e, 48 MiB on v7x."""
    try:
        cap = int(pltpu.get_tpu_info().vmem_capacity_bytes)
    except Exception:
        cap = 64 * 1024 * 1024
    return (cap * 3) // 4


VMEM_LIMIT = _vmem_limit_bytes()
ATTN_TILE_CAP = 512 if VMEM_LIMIT >= 60 * 1024 * 1024 else 256


def _pick_tile(n: int, cap: int) -> int:
    """Largest multiple-of-8 tile <= cap dividing n, else the full axis."""
    t = min(cap, n)
    t -= t % 8
    while t >= 8:
        if n % t == 0:
            return t
        t -= 8
    return n


def _pick_kv_tile(n: int, cap: int) -> int:
    """Largest multiple-of-16 tile <= cap dividing n (so tk//2 is a multiple of
    8 and satisfies the (8,128) block constraint), else the full axis."""
    t = min(cap, n)
    t -= t % 16
    while t >= 16:
        if n % t == 0:
            return t
        t -= 16
    return n


# ---------------------------------------------------------------- kernels ---

def _ln_qkv_kernel(x_ref, g_ref, b_ref, wq_ref, wkv_ref, q_ref, kv_ref):
    # x (1, ts, dim) f32 ; wq (dim, HD) bf16 (scale pre-folded); wkv (dim, 2HD)
    x = x_ref[0]
    mean = jnp.mean(x, axis=-1, keepdims=True)
    var = jnp.mean((x - mean) ** 2, axis=-1, keepdims=True)
    xn = (x - mean) * jax.lax.rsqrt(var + EPS)
    xn = xn * g_ref[...] + b_ref[...]                        # LayerNorm in f32
    xb = xn.astype(wq_ref.dtype)                             # bf16 MXU operand
    q_ref[0] = jnp.dot(xb, wq_ref[...],
                       preferred_element_type=jnp.float32).astype(q_ref.dtype)
    kv_ref[0] = jnp.dot(xb, wkv_ref[...],
                        preferred_element_type=jnp.float32).astype(kv_ref.dtype)


def _ln_q_kernel(x_ref, g_ref, b_ref, wq_ref, q_ref):
    x = x_ref[0]
    mean = jnp.mean(x, axis=-1, keepdims=True)
    var = jnp.mean((x - mean) ** 2, axis=-1, keepdims=True)
    xn = (x - mean) * jax.lax.rsqrt(var + EPS)
    xn = xn * g_ref[...] + b_ref[...]
    q_ref[0] = jnp.dot(xn.astype(wq_ref.dtype), wq_ref[...],
                       preferred_element_type=jnp.float32).astype(q_ref.dtype)


def _proj_kernel(x_ref, w_ref, o_ref):
    o_ref[0] = jnp.dot(x_ref[0].astype(w_ref.dtype), w_ref[...],
                       preferred_element_type=jnp.float32).astype(o_ref.dtype)


def _attn_out_kernel(q_ref, kh_ref, vh_ref, wout_ref, bout_ref, o_ref,
                     m_sc, l_sc, acc_sc, *, n_heads, head_dim):
    # blocks: q (1,tq,HD) bf16 ; kh/vh (1,1,tk2,2HD) bf16 (K/V halves of kv) ;
    #         wout (HD,dim) bf16 ; bout (1,dim) f32 ; o (1,tq,dim) f32
    # scratch: m/l (H,tq,1) f32, acc (H,tq,D) f32  -- flash accumulators.
    # Key row 2t of this KV tile lives in kh[t, :HD], row 2t+1 in kh[t, HD:]
    # (torch's chunk-along-seq + reshape, handled as two column groups).
    i = pl.program_id(1)
    j = pl.program_id(2)
    nk = pl.num_programs(2)
    tq = q_ref.shape[1]
    tk2 = kh_ref.shape[2]
    tk = 2 * tk2
    H, D = n_heads, head_dim
    HD = H * D

    @pl.when(j == 0)
    def _init():
        m_sc[...] = jnp.full(m_sc.shape, NEG_INF, jnp.float32)
        l_sc[...] = jnp.zeros(l_sc.shape, jnp.float32)
        acc_sc[...] = jnp.zeros(acc_sc.shape, jnp.float32)

    needed = j * tk < (i + 1) * tq            # tile intersects causal region
    straddle = (j + 1) * tk - 1 > i * tq      # tile straddles the diagonal

    def process(apply_mask):
        qf = q_ref[0]                         # (tq, HD) bf16, already scaled
        kh = kh_ref[0, 0]                     # (tk2, 2HD) bf16
        vh = vh_ref[0, 0]                     # (tk2, 2HD) bf16
        if apply_mask:
            row = i * tq + jax.lax.broadcasted_iota(jnp.int32, (tq, tk2), 0)
            col = j * tk + 2 * jax.lax.broadcasted_iota(jnp.int32, (tq, tk2), 1)
            mask_e = col <= row               # even key rows (2t)
            mask_o = (col + 1) <= row         # odd key rows (2t+1)
        dn = (((1,), (1,)), ((), ()))
        for h in range(H):                    # heads packed along lanes
            qh = qf[:, h * D:(h + 1) * D]
            ke = kh[:, h * D:(h + 1) * D]
            ko = kh[:, HD + h * D:HD + (h + 1) * D]
            ve = vh[:, h * D:(h + 1) * D]
            vo = vh[:, HD + h * D:HD + (h + 1) * D]
            s_e = jax.lax.dot_general(qh, ke, dn,
                                      preferred_element_type=jnp.float32)
            s_o = jax.lax.dot_general(qh, ko, dn,
                                      preferred_element_type=jnp.float32)
            if apply_mask:
                s_e = jnp.where(mask_e, s_e, NEG_INF)
                s_o = jnp.where(mask_o, s_o, NEG_INF)
            m_prev = m_sc[h]
            m_new = jnp.maximum(
                m_prev, jnp.maximum(jnp.max(s_e, axis=-1, keepdims=True),
                                    jnp.max(s_o, axis=-1, keepdims=True)))
            alpha = jnp.exp(m_prev - m_new)
            p_e = jnp.exp(s_e - m_new)        # stats / exp stay f32 (v5e-safe)
            p_o = jnp.exp(s_o - m_new)
            l_sc[h] = alpha * l_sc[h] + (jnp.sum(p_e, axis=-1, keepdims=True)
                                         + jnp.sum(p_o, axis=-1, keepdims=True))
            pv = (jnp.dot(p_e.astype(jnp.bfloat16), ve,
                          preferred_element_type=jnp.float32)
                  + jnp.dot(p_o.astype(jnp.bfloat16), vo,
                            preferred_element_type=jnp.float32))
            acc_sc[h] = alpha * acc_sc[h] + pv
            m_sc[h] = m_new

    @pl.when(needed & straddle)
    def _masked():
        process(True)

    @pl.when(needed & jnp.logical_not(straddle))
    def _unmasked():
        process(False)                        # fully below diagonal: no mask

    @pl.when(j == nk - 1)
    def _epilogue():
        # Fused output projection; single lane-dense (tq, dim) store.
        dim = o_ref.shape[2]
        out = jnp.zeros((tq, dim), jnp.float32)
        for h in range(H):
            oh = acc_sc[h] * pl.reciprocal(l_sc[h], approx=True)
            out = out + jnp.dot(oh.astype(jnp.bfloat16),
                                wout_ref[h * D:(h + 1) * D, :],
                                preferred_element_type=jnp.float32)
        o_ref[0] = out + bout_ref[...]


# --------------------------------------------------------------- wrappers ---

def _ln_qkv(x, gamma, beta, wq, wkv):
    B, S, dim = x.shape
    HD, KVD = wq.shape[1], wkv.shape[1]
    ts = _pick_tile(S, ATTN_TILE_CAP)
    return pl.pallas_call(
        _ln_qkv_kernel,
        out_shape=(jax.ShapeDtypeStruct((B, S, HD), jnp.bfloat16),
                   jax.ShapeDtypeStruct((B, S, KVD), jnp.bfloat16)),
        grid=(B, S // ts),
        in_specs=[pl.BlockSpec((1, ts, dim), lambda b, i: (b, i, 0)),
                  pl.BlockSpec((1, dim), lambda b, i: (0, 0)),
                  pl.BlockSpec((1, dim), lambda b, i: (0, 0)),
                  pl.BlockSpec((dim, HD), lambda b, i: (0, 0)),
                  pl.BlockSpec((dim, KVD), lambda b, i: (0, 0))],
        out_specs=(pl.BlockSpec((1, ts, HD), lambda b, i: (b, i, 0)),
                   pl.BlockSpec((1, ts, KVD), lambda b, i: (b, i, 0))),
        compiler_params=pltpu.CompilerParams(
            dimension_semantics=("parallel", "parallel"),
            vmem_limit_bytes=VMEM_LIMIT),
    )(x, gamma, beta, wq, wkv)


def _ln_q(x, gamma, beta, wq):
    B, S, dim = x.shape
    HD = wq.shape[1]
    ts = _pick_tile(S, ATTN_TILE_CAP)
    return pl.pallas_call(
        _ln_q_kernel,
        out_shape=jax.ShapeDtypeStruct((B, S, HD), jnp.bfloat16),
        grid=(B, S // ts),
        in_specs=[pl.BlockSpec((1, ts, dim), lambda b, i: (b, i, 0)),
                  pl.BlockSpec((1, dim), lambda b, i: (0, 0)),
                  pl.BlockSpec((1, dim), lambda b, i: (0, 0)),
                  pl.BlockSpec((dim, HD), lambda b, i: (0, 0))],
        out_specs=pl.BlockSpec((1, ts, HD), lambda b, i: (b, i, 0)),
        compiler_params=pltpu.CompilerParams(
            dimension_semantics=("parallel", "parallel"),
            vmem_limit_bytes=VMEM_LIMIT),
    )(x, gamma, beta, wq)


def _proj(x, w):
    B, T, dim = x.shape
    N = w.shape[1]
    ts = _pick_tile(T, ATTN_TILE_CAP)
    return pl.pallas_call(
        _proj_kernel,
        out_shape=jax.ShapeDtypeStruct((B, T, N), jnp.bfloat16),
        grid=(B, T // ts),
        in_specs=[pl.BlockSpec((1, ts, dim), lambda b, i: (b, i, 0)),
                  pl.BlockSpec((dim, N), lambda b, i: (0, 0))],
        out_specs=pl.BlockSpec((1, ts, N), lambda b, i: (b, i, 0)),
        compiler_params=pltpu.CompilerParams(
            dimension_semantics=("parallel", "parallel"),
            vmem_limit_bytes=VMEM_LIMIT),
    )(x, w)


def _attn_out(q, kv4, wout, bout, *, n_heads, head_dim):
    B, S, HD = q.shape
    half = kv4.shape[2]
    T = 2 * half                               # effective K/V sequence length
    dim = wout.shape[1]
    tq = _pick_tile(S, ATTN_TILE_CAP)
    tk = _pick_kv_tile(T, ATTN_TILE_CAP)
    tk2 = tk // 2
    nk = T // tk

    def kv_map(half_idx):
        def index_map(b, i, j):
            # Clamp to the last causally-needed KV tile: blocks above the
            # diagonal repeat the previous index, so their DMAs are elided.
            jm = jnp.minimum(j, ((i + 1) * tq - 1) // tk)
            return (b, half_idx, jm, 0)
        return index_map

    kernel = functools.partial(_attn_out_kernel, n_heads=n_heads,
                               head_dim=head_dim)
    return pl.pallas_call(
        kernel,
        out_shape=jax.ShapeDtypeStruct((B, S, dim), jnp.float32),
        grid=(B, S // tq, nk),
        in_specs=[pl.BlockSpec((1, tq, HD), lambda b, i, j: (b, i, 0)),
                  pl.BlockSpec((1, 1, tk2, 2 * HD), kv_map(0)),   # K half
                  pl.BlockSpec((1, 1, tk2, 2 * HD), kv_map(1)),   # V half
                  pl.BlockSpec((HD, dim), lambda b, i, j: (0, 0)),
                  pl.BlockSpec((1, dim), lambda b, i, j: (0, 0))],
        out_specs=pl.BlockSpec((1, tq, dim), lambda b, i, j: (b, i, 0)),
        scratch_shapes=[pltpu.VMEM((n_heads, tq, 1), jnp.float32),
                        pltpu.VMEM((n_heads, tq, 1), jnp.float32),
                        pltpu.VMEM((n_heads, tq, head_dim), jnp.float32)],
        compiler_params=pltpu.CompilerParams(
            dimension_semantics=("parallel", "parallel", "arbitrary"),
            vmem_limit_bytes=VMEM_LIMIT),
    )(q, kv4, kv4, wout, bout)


def cross_attention(params, x, ctx=None, *, n_heads, head_dim):
    """Pallas port of CrossAttention.forward.  x: (B, S, dim); ctx optional."""
    B, S, dim = x.shape
    HD = n_heads * head_dim
    scale = 1.0 / float(head_dim) ** 0.5
    wq = (params["wq"] * scale).astype(jnp.bfloat16)   # fold 1/sqrt(D) into wq
    wkv = params["wkv"].astype(jnp.bfloat16)
    wout = params["wout"].astype(jnp.bfloat16)

    if ctx is None:
        # Fused LayerNorm + Q + KV (xn never written to HBM).
        q, kv = _ln_qkv(x, params["gamma"], params["beta"], wq, wkv)
    else:
        q = _ln_q(x, params["gamma"], params["beta"], wq)
        kv = _proj(ctx.astype(jnp.bfloat16), wkv)   # ctx is NOT normalized

    Tc = kv.shape[1]
    assert Tc % 2 == 0, "torch .chunk(2, dim=1) path requires an even length"
    # torch's chunk-along-seq + reshape + permute == this free bitcast view:
    # kv4[b, 0] holds the rows feeding K, kv4[b, 1] the rows feeding V; the
    # row interleave is resolved inside the attention kernel (no HBM copy).
    kv4 = kv.reshape(B, 2, Tc // 2, 2 * HD)

    # Causal (top-left aligned) mask on both paths, matching
    # F.scaled_dot_product_attention(..., is_causal=True) in the module.
    return _attn_out(q, kv4, wout, params["bout"],
                     n_heads=n_heads, head_dim=head_dim)


# -------------------------------------------------------------- reference ---

def reference(params, x, ctx=None, *, n_heads, head_dim):
    B, S, dim = x.shape
    mean = x.mean(-1, keepdims=True)
    var = ((x - mean) ** 2).mean(-1, keepdims=True)
    xn = (x - mean) / jnp.sqrt(var + EPS) * params["gamma"][0] + params["beta"][0]
    c = xn if ctx is None else ctx
    q = xn @ params["wq"]
    kv = c @ params["wkv"]
    half = kv.shape[1] // 2
    k = kv[:, :half].reshape(B, -1, n_heads, head_dim).transpose(0, 2, 1, 3)
    v = kv[:, half:].reshape(B, -1, n_heads, head_dim).transpose(0, 2, 1, 3)
    qh = q.reshape(B, S, n_heads, head_dim).transpose(0, 2, 1, 3)
    scale = 1.0 / jnp.sqrt(jnp.float32(head_dim))
    s = jnp.einsum("bhqd,bhkd->bhqk", qh, k) * scale
    T = k.shape[2]
    mask = jnp.arange(T)[None, :] <= jnp.arange(S)[:, None]
    s = jnp.where(mask, s, -jnp.inf)
    p = jax.nn.softmax(s, axis=-1)
    o = jnp.einsum("bhqk,bhkd->bhqd", p, v)
    h = o.transpose(0, 2, 1, 3).reshape(B, S, n_heads * head_dim)
    return h @ params["wout"] + params["bout"][0]


# ------------------------------------------------------------------- main ---

if __name__ == "__main__":
    B, S = 2, 8
    dim, n_heads, head_dim = 32, 2, 16
    HD = n_heads * head_dim

    key = jax.random.PRNGKey(0)
    k1, k2, k3, k4, k5, k6, kx, kc = jax.random.split(key, 8)
    params = dict(
        gamma=(1.0 + 0.1 * jax.random.normal(k1, (1, dim))).astype(jnp.float32),
        beta=(0.1 * jax.random.normal(k2, (1, dim))).astype(jnp.float32),
        wq=(0.08 * jax.random.normal(k3, (dim, HD))).astype(jnp.float32),
        wkv=(0.08 * jax.random.normal(k4, (dim, 2 * HD))).astype(jnp.float32),
        wout=(0.08 * jax.random.normal(k5, (HD, dim))).astype(jnp.float32),
        bout=(0.02 * jax.random.normal(k6, (1, dim))).astype(jnp.float32),
    )
    x = jax.random.normal(kx, (B, S, dim), dtype=jnp.float32)
    ctx = jax.random.normal(kc, (B, 16, dim), dtype=jnp.float32)

    # Tolerance reflects bf16 MXU operands / bf16 intermediates vs an f32 ref.
    TOL = 3e-2

    out = cross_attention(params, x, ctx=None, n_heads=n_heads, head_dim=head_dim)
    out = jax.block_until_ready(out)
    ref = reference(params, x, n_heads=n_heads, head_dim=head_dim)
    assert out.shape == (B, S, dim)
    assert jnp.allclose(out, ref, atol=TOL, rtol=TOL), float(
        jnp.max(jnp.abs(out - ref)))

    out_c = cross_attention(params, x, ctx=ctx, n_heads=n_heads, head_dim=head_dim)
    out_c = jax.block_until_ready(out_c)
    ref_c = reference(params, x, ctx=ctx, n_heads=n_heads, head_dim=head_dim)
    assert out_c.shape == (B, S, dim)
    assert jnp.allclose(out_c, ref_c, atol=TOL, rtol=TOL), float(
        jnp.max(jnp.abs(out_c - ref_c)))

    print("KERNEL_OK")
</pallas_src>

<mosaic_0001>
module attributes {stable_mosaic.version = 11 : i64} {
  func.func @_ln_qkv_kernel(%arg0: i32, %arg1: i32, %arg2: memref<1x8x32xf32, #tpu.memory_space<vmem>>, %arg3: memref<1x32xf32, #tpu.memory_space<vmem>>, %arg4: memref<1x32xf32, #tpu.memory_space<vmem>>, %arg5: memref<32x32xbf16, #tpu.memory_space<vmem>>, %arg6: memref<32x64xbf16, #tpu.memory_space<vmem>>, %arg7: memref<1x8x32xbf16, #tpu.memory_space<vmem>>, %arg8: memref<1x8x64xbf16, #tpu.memory_space<vmem>>) attributes {dimension_semantics = [#tpu.dimension_semantics<parallel>, #tpu.dimension_semantics<parallel>], iteration_bounds = array<i64: 2, 1>, scalar_prefetch = 0 : i64, scratch_operands = 0 : i64, tpu.core_type = #tpu.core_type<tc>, window_params = [{transform_indices = @transform_0, window_bounds = array<i64: 1, 8, 32>}, {pipeline_mode = #tpu.pipeline_mode<synchronous>, transform_indices = @transform_1, window_bounds = array<i64: 1, 32>}, {pipeline_mode = #tpu.pipeline_mode<synchronous>, transform_indices = @transform_2, window_bounds = array<i64: 1, 32>}, {pipeline_mode = #tpu.pipeline_mode<synchronous>, transform_indices = @transform_3, window_bounds = array<i64: 32, 32>}, {pipeline_mode = #tpu.pipeline_mode<synchronous>, transform_indices = @transform_4, window_bounds = array<i64: 32, 64>}, {transform_indices = @transform_5, window_bounds = array<i64: 1, 8, 32>}, {transform_indices = @transform_6, window_bounds = array<i64: 1, 8, 64>}]} {
    %c0 = arith.constant 0 : index
    %c0_0 = arith.constant 0 : index
    %c0_1 = arith.constant 0 : index
    %0 = vector.load %arg2[%c0, %c0_0, %c0_1] : memref<1x8x32xf32, #tpu.memory_space<vmem>>, vector<1x8x32xf32>
    %1 = vector.shape_cast %0 : vector<1x8x32xf32> to vector<8x32xf32>
    %cst = arith.constant dense<0.000000e+00> : vector<8xf32>
    %2 = vector.multi_reduction <add>, %1, %cst [1] : vector<8x32xf32> to vector<8xf32>
    %3 = vector.shape_cast %2 : vector<8xf32> to vector<8x1xf32>
    %cst_2 = arith.constant 3.200000e+01 : f32
    %4 = vector.broadcast %cst_2 : f32 to vector<8x1xf32>
    %5 = arith.divf %3, %4 : vector<8x1xf32>
    %6 = vector.broadcast %5 : vector<8x1xf32> to vector<8x32xf32>
    %7 = arith.subf %1, %6 : vector<8x32xf32>
    %8 = arith.mulf %7, %7 : vector<8x32xf32>
    %cst_3 = arith.constant dense<0.000000e+00> : vector<8xf32>
    %9 = vector.multi_reduction <add>, %8, %cst_3 [1] : vector<8x32xf32> to vector<8xf32>
    %10 = vector.shape_cast %9 : vector<8xf32> to vector<8x1xf32>
    %cst_4 = arith.constant 3.200000e+01 : f32
    %11 = vector.broadcast %cst_4 : f32 to vector<8x1xf32>
    %12 = arith.divf %10, %11 : vector<8x1xf32>
    %13 = vector.broadcast %5 : vector<8x1xf32> to vector<8x32xf32>
    %14 = arith.subf %1, %13 : vector<8x32xf32>
    %cst_5 = arith.constant 9.99999974E-6 : f32
    %15 = vector.broadcast %cst_5 : f32 to vector<8x1xf32>
    %16 = arith.addf %12, %15 : vector<8x1xf32>
    %17 = math.rsqrt %16 : vector<8x1xf32>
    %18 = vector.broadcast %17 : vector<8x1xf32> to vector<8x32xf32>
    %19 = arith.mulf %14, %18 : vector<8x32xf32>
    %c0_6 = arith.constant 0 : index
    %c0_7 = arith.constant 0 : index
    %20 = vector.load %arg3[%c0_6, %c0_7] : memref<1x32xf32, #tpu.memory_space<vmem>>, vector<1x32xf32>
    %21 = vector.broadcast %20 : vector<1x32xf32> to vector<8x32xf32>
    %22 = arith.mulf %19, %21 : vector<8x32xf32>
    %c0_8 = arith.constant 0 : index
    %c0_9 = arith.constant 0 : index
    %23 = vector.load %arg4[%c0_8, %c0_9] : memref<1x32xf32, #tpu.memory_space<vmem>>, vector<1x32xf32>
    %24 = vector.broadcast %23 : vector<1x32xf32> to vector<8x32xf32>
    %25 = arith.addf %22, %24 : vector<8x32xf32>
    %26 = arith.truncf %25 : vector<8x32xf32> to vector<8x32xbf16>
    %c0_10 = arith.constant 0 : index
    %c0_11 = arith.constant 0 : index
    %27 = vector.load %arg5[%c0_10, %c0_11] : memref<32x32xbf16, #tpu.memory_space<vmem>>, vector<32x32xbf16>
    %cst_12 = arith.constant dense<0.000000e+00> : vector<8x32xf32>
    %28 = tpu.matmul %26, %27, %cst_12 {dimension_numbers = #tpu.dot_dimension_numbers<[1], [0], [0], [1], [0, 0, 1, 1], [], []>} : vector<8x32xbf16>, vector<32x32xbf16>, vector<8x32xf32> -> vector<8x32xf32>
    %29 = arith.truncf %28 : vector<8x32xf32> to vector<8x32xbf16>
    %c0_13 = arith.constant 0 : index
    %c0_14 = arith.constant 0 : index
    %c0_15 = arith.constant 0 : index
    %30 = vector.load %arg7[%c0_13, %c0_14, %c0_15] : memref<1x8x32xbf16, #tpu.memory_space<vmem>>, vector<1x8x32xbf16>
    %31 = vector.shape_cast %30 : vector<1x8x32xbf16> to vector<8x32xbf16>
    %32 = vector.shape_cast %29 : vector<8x32xbf16> to vector<1x8x32xbf16>
    tpu.vector_store %arg7[%c0_13, %c0_14, %c0_15], %32 {strides = array<i32>} : memref<1x8x32xbf16, #tpu.memory_space<vmem>>, vector<1x8x32xbf16>,
    %c0_16 = arith.constant 0 : index
    %c0_17 = arith.constant 0 : index
    %33 = vector.load %arg6[%c0_16, %c0_17] : memref<32x64xbf16, #tpu.memory_space<vmem>>, vector<32x64xbf16>
    %cst_18 = arith.constant dense<0.000000e+00> : vector<8x64xf32>
    %34 = tpu.matmul %26, %33, %cst_18 {dimension_numbers = #tpu.dot_dimension_numbers<[1], [0], [0], [1], [0, 0, 1, 1], [], []>} : vector<8x32xbf16>, vector<32x64xbf16>, vector<8x64xf32> -> vector<8x64xf32>
    %35 = arith.truncf %34 : vector<8x64xf32> to vector<8x64xbf16>
    %c0_19 = arith.constant 0 : index
    %c0_20 = arith.constant 0 : index
    %c0_21 = arith.constant 0 : index
    %36 = vector.load %arg8[%c0_19, %c0_20, %c0_21] : memref<1x8x64xbf16, #tpu.memory_space<vmem>>, vector<1x8x64xbf16>
    %37 = vector.shape_cast %36 : vector<1x8x64xbf16> to vector<8x64xbf16>
    %38 = vector.shape_cast %35 : vector<8x64xbf16> to vector<1x8x64xbf16>
    tpu.vector_store %arg8[%c0_19, %c0_20, %c0_21], %38 {strides = array<i32>} : memref<1x8x64xbf16, #tpu.memory_space<vmem>>, vector<1x8x64xbf16>,
    return
  }
  func.func @transform_0(%arg0: i32, %arg1: i32) -> (i32, i32, i32) {
    %c0_i32 = arith.constant 0 : i32
    %c0_i32_0 = arith.constant 0 : i32
    return %arg0, %arg1, %c0_i32 : i32, i32, i32
  }
  func.func @transform_1(%arg0: i32, %arg1: i32) -> (i32, i32) {
    %c0_i32 = arith.constant 0 : i32
    %c0_i32_0 = arith.constant 0 : i32
    %c0_i32_1 = arith.constant 0 : i32
    return %c0_i32, %c0_i32_0 : i32, i32
  }
  func.func @transform_2(%arg0: i32, %arg1: i32) -> (i32, i32) {
    %c0_i32 = arith.constant 0 : i32
    %c0_i32_0 = arith.constant 0 : i32
    %c0_i32_1 = arith.constant 0 : i32
    return %c0_i32, %c0_i32_0 : i32, i32
  }
  func.func @transform_3(%arg0: i32, %arg1: i32) -> (i32, i32) {
    %c0_i32 = arith.constant 0 : i32
    %c0_i32_0 = arith.constant 0 : i32
    %c0_i32_1 = arith.constant 0 : i32
    return %c0_i32, %c0_i32_0 : i32, i32
  }
  func.func @transform_4(%arg0: i32, %arg1: i32) -> (i32, i32) {
    %c0_i32 = arith.constant 0 : i32
    %c0_i32_0 = arith.constant 0 : i32
    %c0_i32_1 = arith.constant 0 : i32
    return %c0_i32, %c0_i32_0 : i32, i32
  }
  func.func @transform_5(%arg0: i32, %arg1: i32) -> (i32, i32, i32) {
    %c0_i32 = arith.constant 0 : i32
    %c0_i32_0 = arith.constant 0 : i32
    return %arg0, %arg1, %c0_i32 : i32, i32, i32
  }
  func.func @transform_6(%arg0: i32, %arg1: i32) -> (i32, i32, i32) {
    %c0_i32 = arith.constant 0 : i32
    %c0_i32_0 = arith.constant 0 : i32
    return %arg0, %arg1, %c0_i32 : i32, i32, i32
  }
}

</mosaic_0001>

<llo_original>
// kernel: tpu_custom_call.1
$region0: #{tpu_custom_call.1}
  #allocation0 [shape = 'u32[]', space=smem, size = 0x4, offset = 0x4, fixed_abs, tag = 'smem constant byte address 0x4 - core index']
  #allocation1 [shape = 'u32[144,128]{1,0:T(1,128)}', space=vmem, size = 0x12000, scoped, tag = 'internal scratch']
  %s0 = inlined_call_operand.hbm [shape: f32[2,8,32], index: 0, kind: input, shape index: {}]
  %s1 = inlined_call_operand.vmem [shape: f32[1,32], index: 1, kind: input, shape index: {}]
  %s2 = inlined_call_operand.vmem [shape: f32[1,32], index: 2, kind: input, shape index: {}]
  %s3 = inlined_call_operand.hbm [shape: bf16[32,32], index: 3, kind: input, shape index: {}]
  %s4 = inlined_call_operand.hbm [shape: bf16[32,64], index: 4, kind: input, shape index: {}]
  %s5 = inlined_call_operand.hbm [shape: bf16[2,8,32], index: 5, kind: output, shape index: {0}]
  %s6 = inlined_call_operand.hbm [shape: bf16[2,8,64], index: 6, kind: output, shape index: {1}]
  %7 = xla_tuple %s5, %s6
  %s8 = sld [smem:[#allocation0]]
  $region73: #{tpu_custom_call.1} parent=0
    _
  %s10 = ssub.s32 1, %s8
  %s11 = scalar_select 0, %s10, %s8
  $region1: #{tpu_custom_call.1} parent=0
    #allocation2 [shape = 'u8[8192]{0}', space=vmem, size = 0x2000, scoped, tag = 'input window, operand 0']
    #allocation3 [shape = 's32[2]{0}', space=sflag, size = 0x8, scoped, tag = 'scoped memory for tpu_custom_call.1']
    #allocation4 [shape = 's32[2]{0}', space=sflag, size = 0x8, scoped, tag = 'scoped memory for tpu_custom_call.1']
    #allocation5 [shape = 'u8[8192]{0}', space=vmem, size = 0x2000, scoped, tag = 'input window, operand 3, single buffered']
    #allocation6 [shape = 's32[1]{0}', space=sflag, size = 0x4, scoped, tag = 'scoped memory for tpu_custom_call.1']
    #allocation7 [shape = 'u8[8192]{0}', space=vmem, size = 0x2000, scoped, tag = 'input window, operand 4, single buffered']
    #allocation8 [shape = 'u8[4096]{0}', space=vmem, size = 0x1000, scoped, tag = 'output window, operand 0']
    #allocation9 [shape = 'u8[4096]{0}', space=vmem, size = 0x1000, scoped, tag = 'output window, operand 1']
    #allocation10 [shape = 's32[2]{0}', space=sflag, size = 0x8, scoped, tag = 'scoped memory for tpu_custom_call.1']
    %12 = vsyncpa [#allocation3], 0
    %s13 = scalar_lea.sflag [#allocation3], 1
    %14 = vsyncpa %s13, 0
    %15 = vsyncpa [#allocation6], 0
    %16 = vsyncpa [#allocation4], 0
    %s17 = scalar_lea.sflag [#allocation4], 1
    %18 = vsyncpa %s17, 0
    %19 = vsyncpa [#allocation10], 0
    %s20 = scalar_lea.sflag [#allocation10], 1
    %21 = vsyncpa %s20, 0
    loop: start=0, step=1, limit=4
    $region2: #{tpu_custom_call.1} parent=1 // loop_pre_header
      _
    $region3: #{tpu_custom_call.1} parent=1 // loop_header
      %s23 = sphi 0, %s27
      %p24 = scmp.ge.s32.totalorder %s23, 4
      %s30 = sphi 0, %s42
      %s31 = sphi 0, %s38
      %s32 = sphi 0, %s30
      %s33 = sphi 0, %s31
      %s34 = sphi 0, %s32
      %s35 = sphi 0, %s33
      %s47 = sphi 0, %s49
      %s50 = sphi 0, %s47
      %s51 = sphi 0, %s50
      %s67 = sphi 0, %s51
      %s71 = sphi 0, %s71
      %s73 = sphi 0, %s71
      %s74 = sphi 0, %s73
      %s88 = sphi 0, %s74
      %s92 = sphi 0, %s92
      %s94 = sphi 0, %s92
      %s95 = sphi 0, %s94
      %s109 = sphi 0, %s95
      %s113 = sphi 0, %s113
      %s115 = sphi 0, %s113
      %s116 = sphi 0, %s115
      %s130 = sphi 0, %s116
      %s134 = sphi 0, %s134
      %s136 = sphi 0, %s134
      %s137 = sphi 0, %s136
      %s151 = sphi 0, %s137
      %s159 = sphi 0, %s161
      %s162 = sphi 0, %s159
      %s163 = sphi 0, %s162
      %s179 = sphi 0, %s163
      %s187 = sphi 0, %s189
      %s190 = sphi 0, %s187
      %s191 = sphi 0, %s190
      %s207 = sphi 0, %s191
    $region4: #{tpu_custom_call.1} parent=1 // loop_header_branch
      %26 = sbr.rel (%p24) target = $region8
    $region5: #{tpu_custom_call.1} parent=1 // loop_body
      %s28 = ssub.s32 %s23, 1
      %s29 = ssub.s32 %s23, 2
      %s36 = sadd.s32 1, %s31
      %p37 = scmp.ge.s32.totalorder %s36, 1
      %s38 = scalar_select %p37, 0, %s36
      %s39 = sadd.s32 1, %s30
      %s40 = scalar_select %p37, %s39, %s30
      %p41 = scmp.ge.s32.totalorder %s40, 2
      %s42 = scalar_select %p41, 0, %s40
      %s43 = ssub.s32 %s30, %s42
      %s44 = ssub.s32 %s31, %s38
      %s45 = sor.u32 %s43, %s44
      %p46 = scmp.eq.s32.totalorder %s45, 0
      %s48 = sadd.s32 %s47, 1
      %s49 = scalar_select %p46, %s47, %s48
      %p52 = pneg %p46
      %p53 = scmp.eq.s32.totalorder %s23, 1
      %p54 = por %p52, %p53
      %p55 = scmp.ne.s32.totalorder %s47, %s50
      %p56 = scmp.eq.s32.totalorder %s23, 0
      %p57 = por %p55, %p56
      %p58 = scmp.ne.s32.totalorder %s47, %s50
      %p59 = scmp.eq.s32.totalorder %s28, 1
      %p60 = por %p58, %p59
      %p61 = scmp.ne.s32.totalorder %s50, %s51
      %p62 = scmp.eq.s32.totalorder %s28, 0
      %p63 = por %p61, %p62
      %p64 = scmp.ne.s32.totalorder %s50, %s51
      %p65 = scmp.eq.s32.totalorder %s29, 1
      %p66 = por %p64, %p65
      %p68 = scmp.ne.s32.totalorder %s51, %s67
      %p69 = scmp.eq.s32.totalorder %s29, 0
      %p70 = por %p68, %p69
      %s72 = sadd.s32 %s71, 1
      %p75 = scmp.eq.s32.totalorder %s23, 1
      %p76 = scmp.ne.s32.totalorder %s71, %s73
      %p77 = scmp.eq.s32.totalorder %s23, 0
      %p78 = por %p76, %p77
      %p79 = scmp.ne.s32.totalorder %s71, %s73
      %p80 = scmp.eq.s32.totalorder %s28, 1
      %p81 = por %p79, %p80
      %p82 = scmp.ne.s32.totalorder %s73, %s74
      %p83 = scmp.eq.s32.totalorder %s28, 0
      %p84 = por %p82, %p83
      %p85 = scmp.ne.s32.totalorder %s73, %s74
      %p86 = scmp.eq.s32.totalorder %s29, 1
      %p87 = por %p85, %p86
      %p89 = scmp.ne.s32.totalorder %s74, %s88
      %p90 = scmp.eq.s32.totalorder %s29, 0
      %p91 = por %p89, %p90
      %s93 = sadd.s32 %s92, 1
      %p96 = scmp.eq.s32.totalorder %s23, 1
      %p97 = scmp.ne.s32.totalorder %s92, %s94
      %p98 = scmp.eq.s32.totalorder %s23, 0
      %p99 = por %p97, %p98
      %p100 = scmp.ne.s32.totalorder %s92, %s94
      %p101 = scmp.eq.s32.totalorder %s28, 1
      %p102 = por %p100, %p101
      %p103 = scmp.ne.s32.totalorder %s94, %s95
      %p104 = scmp.eq.s32.totalorder %s28, 0
      %p105 = por %p103, %p104
      %p106 = scmp.ne.s32.totalorder %s94, %s95
      %p107 = scmp.eq.s32.totalorder %s29, 1
      %p108 = por %p106, %p107
      %p110 = scmp.ne.s32.totalorder %s95, %s109
      %p111 = scmp.eq.s32.totalorder %s29, 0
      %p112 = por %p110, %p111
      %s114 = sadd.s32 %s113, 1
      %p117 = scmp.eq.s32.totalorder %s23, 1
      %p118 = scmp.ne.s32.totalorder %s113, %s115
      %p119 = scmp.eq.s32.totalorder %s23, 0
      %p120 = por %p118, %p119
      %p121 = scmp.ne.s32.totalorder %s113, %s115
      %p122 = scmp.eq.s32.totalorder %s28, 1
      %p123 = por %p121, %p122
      %p124 = scmp.ne.s32.totalorder %s115, %s116
      %p125 = scmp.eq.s32.totalorder %s28, 0
      %p126 = por %p124, %p125
      %p127 = scmp.ne.s32.totalorder %s115, %s116
      %p128 = scmp.eq.s32.totalorder %s29, 1
      %p129 = por %p127, %p128
      %p131 = scmp.ne.s32.totalorder %s116, %s130
      %p132 = scmp.eq.s32.totalorder %s29, 0
      %p133 = por %p131, %p132
      %s135 = sadd.s32 %s134, 1
      %p138 = scmp.eq.s32.totalorder %s23, 1
      %p139 = scmp.ne.s32.totalorder %s134, %s136
      %p140 = scmp.eq.s32.totalorder %s23, 0
      %p141 = por %p139, %p140
      %p142 = scmp.ne.s32.totalorder %s134, %s136
      %p143 = scmp.eq.s32.totalorder %s28, 1
      %p144 = por %p142, %p143
      %p145 = scmp.ne.s32.totalorder %s136, %s137
      %p146 = scmp.eq.s32.totalorder %s28, 0
      %p147 = por %p145, %p146
      %p148 = scmp.ne.s32.totalorder %s136, %s137
      %p149 = scmp.eq.s32.totalorder %s29, 1
      %p150 = por %p148, %p149
      %p152 = scmp.ne.s32.totalorder %s137, %s151
      %p153 = scmp.eq.s32.totalorder %s29, 0
      %p154 = por %p152, %p153
      %s155 = ssub.s32 %s30, %s42
      %s156 = ssub.s32 %s31, %s38
      %s157 = sor.u32 %s155, %s156
      %p158 = scmp.eq.s32.totalorder %s157, 0
      %s160 = sadd.s32 %s159, 1
      %s161 = scalar_select %p158, %s159, %s160
      %p164 = pneg %p158
      %p165 = scmp.eq.s32.totalorder %s23, 1
      %p166 = por %p164, %p165
      %p167 = scmp.ne.s32.totalorder %s159, %s162
      %p168 = scmp.eq.s32.totalorder %s23, 0
      %p169 = por %p167, %p168
      %p170 = scmp.ne.s32.totalorder %s159, %s162
      %p171 = scmp.eq.s32.totalorder %s28, 1
      %p172 = por %p170, %p171
      %p173 = scmp.ne.s32.totalorder %s162, %s163
      %p174 = scmp.eq.s32.totalorder %s28, 0
      %p175 = por %p173, %p174
      %p176 = scmp.ne.s32.totalorder %s162, %s163
      %p177 = scmp.eq.s32.totalorder %s29, 1
      %p178 = por %p176, %p177
      %p180 = scmp.ne.s32.totalorder %s163, %s179
      %p181 = scmp.eq.s32.totalorder %s29, 0
      %p182 = por %p180, %p181
      %s183 = ssub.s32 %s30, %s42
      %s184 = ssub.s32 %s31, %s38
      %s185 = sor.u32 %s183, %s184
      %p186 = scmp.eq.s32.totalorder %s185, 0
      %s188 = sadd.s32 %s187, 1
      %s189 = scalar_select %p186, %s187, %s188
      %p192 = pneg %p186
      %p193 = scmp.eq.s32.totalorder %s23, 1
      %p194 = por %p192, %p193
      %p195 = scmp.ne.s32.totalorder %s187, %s190
      %p196 = scmp.eq.s32.totalorder %s23, 0
      %p197 = por %p195, %p196
      %p198 = scmp.ne.s32.totalorder %s187, %s190
      %p199 = scmp.eq.s32.totalorder %s28, 1
      %p200 = por %p198, %p199
      %p201 = scmp.ne.s32.totalorder %s190, %s191
      %p202 = scmp.eq.s32.totalorder %s28, 0
      %p203 = por %p201, %p202
      %p204 = scmp.ne.s32.totalorder %s190, %s191
      %p205 = scmp.eq.s32.totalorder %s29, 1
      %p206 = por %p204, %p205
      %p208 = scmp.ne.s32.totalorder %s191, %s207
      %p209 = scmp.eq.s32.totalorder %s29, 0
      %p210 = por %p208, %p209
      %p211 = scmp.le.s32.totalorder 1, %s23
      %p212 = scmp.lt.s32.totalorder %s23, 3
      %p213 = pnand %p211, %p212
      %p214 = pneg %p213
      // Predicated region
      $region9: #{tpu_custom_call.1} parent=5 // pred_check
        _
      $region10: #{tpu_custom_call.1} parent=5 // pred_check_branch
        %216 = sbr.rel (%p213) target = $region12
      $region11: #{tpu_custom_call.1} parent=5 // pred_region
        %s217 = ssub.s32 %s23, 1
        // Predicated region
        $region13: #{tpu_custom_call.1} parent=11 // pred_check
          %p218 = pneg %p84
        $region14: #{tpu_custom_call.1} parent=11 // pred_check_branch
          %220 = sbr.rel (%p218) target = $region16
        $region15: #{tpu_custom_call.1} parent=11 // pred_region
          _
        $region16: #{tpu_custom_call.1} parent=11 // pred_fallthru
          _
        // Predicated region
        $region17: #{tpu_custom_call.1} parent=11 // pred_check
          %p221 = pneg %p105
        $region18: #{tpu_custom_call.1} parent=11 // pred_check_branch
          %223 = sbr.rel (%p221) target = $region20
        $region19: #{tpu_custom_call.1} parent=11 // pred_region
          _
        $region20: #{tpu_custom_call.1} parent=11 // pred_fallthru
          _
        // Predicated region
        $region21: #{tpu_custom_call.1} parent=11 // pred_check
          %p224 = pneg %p126
        $region22: #{tpu_custom_call.1} parent=11 // pred_check_branch
          %226 = sbr.rel (%p224) target = $region24
        $region23: #{tpu_custom_call.1} parent=11 // pred_region
          %s228 = ssub.s32 256, 256
          %229 = vsyncadd [#allocation6], %s228
          %s230 = sshll.u32 [#allocation5], 4
          %s231 = int_to_ptr.vmem [resolvable:$true] %s230
          %236 = dma.hbm_to_vmem [thread:$0]  %s3, 256, %s231, [#allocation6], 64, 64, 4
        $region24: #{tpu_custom_call.1} parent=11 // pred_fallthru
          _
        // Predicated region
        $region25: #{tpu_custom_call.1} parent=11 // pred_check
          %p237 = pneg %p147
        $region26: #{tpu_custom_call.1} parent=11 // pred_check_branch
          %239 = sbr.rel (%p237) target = $region28
        $region27: #{tpu_custom_call.1} parent=11 // pred_region
          %s241 = ssub.s32 256, 256
          %242 = vsyncadd [#allocation6], %s241
          %s243 = sshll.u32 [#allocation7], 4
          %s244 = int_to_ptr.vmem [resolvable:$true] %s243
          %249 = dma.hbm_to_vmem [thread:$0]  %s4, 256, %s244, [#allocation6], 64, 64, 4
        $region28: #{tpu_custom_call.1} parent=11 // pred_fallthru
          _
      $region12: #{tpu_custom_call.1} parent=5 // pred_fallthru
        _
      %p250 = scmp.lt.s32.totalorder %s23, 2
      // Predicated region
      $region29: #{tpu_custom_call.1} parent=5 // pred_check
        %p251 = pneg %p250
      $region30: #{tpu_custom_call.1} parent=5 // pred_check_branch
        %253 = sbr.rel (%p251) target = $region32
      $region31: #{tpu_custom_call.1} parent=5 // pred_region
        // Predicated region
        $region33: #{tpu_custom_call.1} parent=31 // pred_check
          %p254 = pneg %p57
        $region34: #{tpu_custom_call.1} parent=31 // pred_check_branch
          %256 = sbr.rel (%p254) target = $region36
        $region35: #{tpu_custom_call.1} parent=31 // pred_region
          %s257 = sand.u32 %s47, 1
          %s258 = scalar_lea.sflag [#allocation3], %s257
          %s259 = sand.u32 %s47, 1
          %s260 = smul.addr %s259, 8
          %s261 = scalar_lea.vmem [#allocation2], %s260
          %s263 = ssub.s32 128, 128
          %264 = vsyncadd %s258, %s263
          %s265 = sadd.s32 %s31, %s30
          %s266 = smul.addr %s265, 128
          %s267 = scalar_lea.hbm %s0, %s266
          %s269 = sshll.u32 %s261, 4
          %s270 = int_to_ptr.vmem [resolvable:$true] %s269
          %272 = dma.hbm_to_vmem [thread:$0]  %s267, 128, %s270, %s258
        $region36: #{tpu_custom_call.1} parent=31 // pred_fallthru
          _
      $region32: #{tpu_custom_call.1} parent=5 // pred_fallthru
        _
      %p273 = scmp.le.s32.totalorder 1, %s23
      %p274 = scmp.lt.s32.totalorder %s23, 3
      %p275 = pnand %p273, %p274
      %p276 = pneg %p275
      // Predicated region
      $region37: #{tpu_custom_call.1} parent=5 // pred_check
        _
      $region38: #{tpu_custom_call.1} parent=5 // pred_check_branch
        %278 = sbr.rel (%p275) target = $region40
      $region39: #{tpu_custom_call.1} parent=5 // pred_region
        %s279 = ssub.s32 %s23, 1
        %s280 = sand.u32 %s50, 1
        %s281 = scalar_lea.sflag [#allocation3], %s280
        %s282 = sand.u32 %s50, 1
        %s283 = smul.addr %s282, 8
        %s284 = scalar_lea.vmem [#allocation2], %s283
        // Predicated region
        $region41: #{tpu_custom_call.1} parent=39 // pred_check
          %p285 = pneg %p63
        $region42: #{tpu_custom_call.1} parent=39 // pred_check_branch
          %287 = sbr.rel (%p285) target = $region44
        $region43: #{tpu_custom_call.1} parent=39 // pred_region
          %288 = dma.done %s281, 128
        $region44: #{tpu_custom_call.1} parent=39 // pred_fallthru
          _
        // Predicated region
        $region45: #{tpu_custom_call.1} parent=39 // pred_check
          %p289 = pneg %p126
        $region46: #{tpu_custom_call.1} parent=39 // pred_check_branch
          %291 = sbr.rel (%p289) target = $region48
        $region47: #{tpu_custom_call.1} parent=39 // pred_region
          %292 = dma.done [#allocation6], 256
        $region48: #{tpu_custom_call.1} parent=39 // pred_fallthru
          _
        // Predicated region
        $region49: #{tpu_custom_call.1} parent=39 // pred_check
          %p293 = pneg %p147
        $region50: #{tpu_custom_call.1} parent=39 // pred_check_branch
          %295 = sbr.rel (%p293) target = $region52
        $region51: #{tpu_custom_call.1} parent=39 // pred_region
          %296 = dma.done [#allocation6], 256
        $region52: #{tpu_custom_call.1} parent=39 // pred_fallthru
          _
        %s297 = sand.u32 %s50, 1
        %s298 = scalar_lea.sflag [#allocation3], %s297
        %s299 = sand.u32 %s50, 1
        %s300 = smul.addr %s299, 8
        %s301 = scalar_lea.vmem [#allocation2], %s300
        %p302 = pneg %p63
        %p303 = pneg %p60
        %p304 = pneg %p84
        %p305 = pneg %p81
        %p306 = pneg %p105
        %p307 = pneg %p102
        %p308 = pneg %p126
        %p309 = pneg %p123
        %p310 = pneg %p147
        %p311 = pneg %p144
        %p312 = pneg %p175
        %p313 = pneg %p172
        %s314 = sand.u32 %s162, 1
        %s315 = scalar_lea.sflag [#allocation4], %s314
        %s316 = sand.u32 %s162, 1
        %s317 = smul.addr %s316, 4
        %s318 = scalar_lea.vmem [#allocation8], %s317
        %p319 = pneg %p203
        %p320 = pneg %p200
        %s321 = sand.u32 %s190, 1
        %s322 = scalar_lea.sflag [#allocation10], %s321
        %s323 = sand.u32 %s190, 1
        %s324 = smul.addr %s323, 4
        %s325 = scalar_lea.vmem [#allocation9], %s324
        %v327 = vld [vmem:[%s284] sm:$0xff]
        %vm328 = vcmask 261120
        %v329 = vsel %vm328, %v327, 0.0
        %330 = vadd.xlane.f32.xlu0 %v329
        %v331 = vpop.xlane.xlu0 %330
        %v332 = vrcp.pop 32.0
        %v333 = vmul.f32 %v331, %v332
        %v334 = vsub.f32 %v327, %v333
        %v335 = vmul.f32 %v334, %v334
        %v336 = vsel %vm328, %v335, 0.0
        %337 = vadd.xlane.f32.xlu0 %v336
        %v338 = vpop.xlane.xlu0 %337
        %v339 = vmul.f32 %v338, %v332
        %v340 = vadd.f32 %v339, 1e-05
        %v341 = vrsqrt.pop %v340
        %v342 = vmul.f32 %v334, %v341
        %v343 = vld [vmem:[%s1] sm:$0x1]
        %v345 = vlaneseq
        %v346 = vshrl.u32 %v345, 7
        %v347 = vsub.s32 0, %v346
        %v348 = vrot.slane %v343, %v347
        %v350 = vmul.f32 %v342, %v348
        %v351 = vld [vmem:[%s2] sm:$0x1]
        %v353 = vlaneseq
        %v354 = vshrl.u32 %v353, 7
        %v355 = vsub.s32 0, %v354
        %v356 = vrot.slane %v351, %v355
        %v358 = vadd.f32 %v350, %v356
        %v359 = vpack.c.bf16 %v358, %v358
        %v360 = vld [vmem:[#allocation5] sm:$0xf]
        %v361 = vld [vmem:[#allocation5 + $0x4] sm:$0xf]
        %v362 = vld [vmem:[#allocation5 + $0x8] sm:$0xf]
        %v363 = vld [vmem:[#allocation5 + $0xc] sm:$0xf]
        %v368 = vunpack.c.l.b16 %v360
        %v369 = vunpack.c.l.b16 %v361
        %v370 = vunpack.c.l.b16 %v362
        %v371 = vunpack.c.l.b16 %v363
        %v372 = vpack.c.b16 %v369, %v368
        %v373 = vpack.c.b16 %v371, %v370
        %v377 = vsel %vm328, %v359, 0
        %379 = vmatprep.subr.bf16.mxu0 0
        %380 = vmatpush1.bf16.msra.mxu0 %v372
        %381 = vmatprep.subr.bf16.mxu0 0
        %382 = vmatpush1.bf16.msra.mxu0 %v373
        %383 = vmatprep.subr.bf16.mxu0 0
        %384 = vmatpush1.bf16.msra.mxu0 0
        %385 = vmatprep.subr.bf16.mxu0 0
        %386 = vmatpush1.bf16.msra.mxu0 0
        %387 = vmatprep.subr.bf16.mxu0 0
        %388 = vmatpush1.bf16.msra.mxu0 0
        %389 = vmatprep.subr.bf16.mxu0 0
        %390 = vmatpush1.bf16.msra.mxu0 0
        %391 = vmatprep.subr.bf16.mxu0 0
        %392 = vmatpush1.bf16.msra.mxu0 0
        %393 = vmatprep.subr.bf16.mxu0 0
        %394 = vmatpush1.bf16.msra.mxu0 0
        %395 = vmatprep.subr.bf16.mxu0 0
        %396 = vmatpush1.bf16.msra.mxu0 0
        %397 = vmatprep.subr.bf16.mxu0 0
        %398 = vmatpush1.bf16.msra.mxu0 0
        %399 = vmatprep.subr.bf16.mxu0 0
        %400 = vmatpush1.bf16.msra.mxu0 0
        %401 = vmatprep.subr.bf16.mxu0 0
        %402 = vmatpush1.bf16.msra.mxu0 0
        %403 = vmatprep.subr.bf16.mxu0 0
        %404 = vmatpush1.bf16.msra.mxu0 0
        %405 = vmatprep.subr.bf16.mxu0 0
        %406 = vmatpush1.bf16.msra.mxu0 0
        %407 = vmatprep.subr.bf16.mxu0 0
        %408 = vmatpush1.bf16.msra.mxu0 0
        %409 = vmatprep.subr.bf16.mxu0 0
        %410 = vmatpush1.bf16.msra.mxu0 0
        %411 = vmatprep.mubr.bf16.mxu0 0
        %412 = vmatmul.mubr.bf16.gmra.mrb[0].mxu0 %v377
        %v413 = vpop.f32.mrb[0].mxu0
        %v414 = vadd.f32 0.0, %v413
        %v415 = vpop.f32.mrb[0].mxu0
        %v416 = vpop.f32.mrb[0].mxu0
        %v417 = vpop.f32.mrb[0].mxu0
        %418 = vdwg.mxu0
        %v419 = vpack.c.bf16 %v414, %v414
        %vm420 = vcmask 257024
        %421 = vst.msk [vmem:[%s318] sm:$0xf] %vm420, %v419
        %v422 = vld [vmem:[#allocation7] sm:$0xf]
        %v423 = vld [vmem:[#allocation7 + $0x4] sm:$0xf]
        %v424 = vld [vmem:[#allocation7 + $0x8] sm:$0xf]
        %v425 = vld [vmem:[#allocation7 + $0xc] sm:$0xf]
        %v430 = vunpack.c.l.b16 %v422
        %v431 = vunpack.c.l.b16 %v423
        %v432 = vunpack.c.l.b16 %v424
        %v433 = vunpack.c.l.b16 %v425
        %v434 = vpack.c.b16 %v431, %v430
        %v435 = vpack.c.b16 %v433, %v432
        %438 = vmatprep.subr.bf16.mxu0 0
        %439 = vmatpush1.bf16.msra.mxu0 %v434
        %440 = vmatprep.subr.bf16.mxu0 0
        %441 = vmatpush1.bf16.msra.mxu0 %v435
        %442 = vmatprep.subr.bf16.mxu0 0
        %443 = vmatpush1.bf16.msra.mxu0 0
        %444 = vmatprep.subr.bf16.mxu0 0
        %445 = vmatpush1.bf16.msra.mxu0 0
        %446 = vmatprep.subr.bf16.mxu0 0
        %447 = vmatpush1.bf16.msra.mxu0 0
        %448 = vmatprep.subr.bf16.mxu0 0
        %449 = vmatpush1.bf16.msra.mxu0 0
        %450 = vmatprep.subr.bf16.mxu0 0
        %451 = vmatpush1.bf16.msra.mxu0 0
        %452 = vmatprep.subr.bf16.mxu0 0
        %453 = vmatpush1.bf16.msra.mxu0 0
        %454 = vmatprep.subr.bf16.mxu0 0
        %455 = vmatpush1.bf16.msra.mxu0 0
        %456 = vmatprep.subr.bf16.mxu0 0
        %457 = vmatpush1.bf16.msra.mxu0 0
        %458 = vmatprep.subr.bf16.mxu0 0
        %459 = vmatpush1.bf16.msra.mxu0 0
        %460 = vmatprep.subr.bf16.mxu0 0
        %461 = vmatpush1.bf16.msra.mxu0 0
        %462 = vmatprep.subr.bf16.mxu0 0
        %463 = vmatpush1.bf16.msra.mxu0 0
        %464 = vmatprep.subr.bf16.mxu0 0
        %465 = vmatpush1.bf16.msra.mxu0 0
        %466 = vmatprep.subr.bf16.mxu0 0
        %467 = vmatpush1.bf16.msra.mxu0 0
        %468 = vmatprep.subr.bf16.mxu0 0
        %469 = vmatpush1.bf16.msra.mxu0 0
        %470 = vmatprep.mubr.bf16.mxu0 0
        %471 = vmatmul.mubr.bf16.gmra.mrb[0].mxu0 %v377
        %v472 = vpop.f32.mrb[0].mxu0
        %v473 = vadd.f32 0.0, %v472
        %v474 = vpop.f32.mrb[0].mxu0
        %v475 = vpop.f32.mrb[0].mxu0
        %v476 = vpop.f32.mrb[0].mxu0
        %477 = vdwg.mxu0
        %v478 = vpack.c.bf16 %v473, %v473
        %vm479 = vcmask 519168
        %480 = vst.msk [vmem:[%s325] sm:$0xf] %vm479, %v478
        %s481 = sand.u32 %s162, 1
        %s482 = scalar_lea.sflag [#allocation4], %s481
        %s483 = sand.u32 %s162, 1
        %s484 = smul.addr %s483, 4
        %s485 = scalar_lea.vmem [#allocation8], %s484
        %s486 = sand.u32 %s190, 1
        %s487 = scalar_lea.sflag [#allocation10], %s486
        %s488 = sand.u32 %s190, 1
        %s489 = smul.addr %s488, 4
        %s490 = scalar_lea.vmem [#allocation9], %s489
        // Predicated region
        $region53: #{tpu_custom_call.1} parent=39 // pred_check
          %p491 = pneg %p172
        $region54: #{tpu_custom_call.1} parent=39 // pred_check_branch
          %493 = sbr.rel (%p491) target = $region56
        $region55: #{tpu_custom_call.1} parent=39 // pred_region
          %s495 = ssub.s32 64, 64
          %496 = vsyncadd %s482, %s495
          %s497 = sadd.s32 %s33, %s32
          %s498 = smul.addr %s497, 64
          %s499 = scalar_lea.hbm %s5, %s498
          %s501 = sshll.u32 %s485, 4
          %s502 = int_to_ptr.vmem [resolvable:$true] %s501
          %504 = dma.vmem_to_hbm [thread:$0]  %s502, 64, %s499, %s482
        $region56: #{tpu_custom_call.1} parent=39 // pred_fallthru
          _
        // Predicated region
        $region57: #{tpu_custom_call.1} parent=39 // pred_check
          %p505 = pneg %p200
        $region58: #{tpu_custom_call.1} parent=39 // pred_check_branch
          %507 = sbr.rel (%p505) target = $region60
        $region59: #{tpu_custom_call.1} parent=39 // pred_region
          %s509 = ssub.s32 64, 64
          %510 = vsyncadd %s487, %s509
          %s511 = sadd.s32 %s33, %s32
          %s512 = smul.addr %s511, 64
          %s513 = scalar_lea.hbm %s6, %s512
          %s515 = sshll.u32 %s490, 4
          %s516 = int_to_ptr.vmem [resolvable:$true] %s515
          %518 = dma.vmem_to_hbm [thread:$0]  %s516, 64, %s513, %s487
        $region60: #{tpu_custom_call.1} parent=39 // pred_fallthru
          _
      $region40: #{tpu_custom_call.1} parent=5 // pred_fallthru
        _
      %p519 = scmp.le.s32.totalorder 2, %s23
      // Predicated region
      $region61: #{tpu_custom_call.1} parent=5 // pred_check
        %p520 = pneg %p519
      $region62: #{tpu_custom_call.1} parent=5 // pred_check_branch
        %522 = sbr.rel (%p520) target = $region64
      $region63: #{tpu_custom_call.1} parent=5 // pred_region
        %s523 = ssub.s32 %s23, 2
        // Predicated region
        $region65: #{tpu_custom_call.1} parent=63 // pred_check
          %p524 = pneg %p178
        $region66: #{tpu_custom_call.1} parent=63 // pred_check_branch
          %526 = sbr.rel (%p524) target = $region68
        $region67: #{tpu_custom_call.1} parent=63 // pred_region
          %s527 = sand.u32 %s163, 1
          %s528 = scalar_lea.sflag [#allocation4], %s527
          %s529 = sand.u32 %s163, 1
          %s530 = smul.addr %s529, 4
          %s531 = scalar_lea.vmem [#allocation8], %s530
          %532 = dma.done %s528, 64
        $region68: #{tpu_custom_call.1} parent=63 // pred_fallthru
          _
        // Predicated region
        $region69: #{tpu_custom_call.1} parent=63 // pred_check
          %p533 = pneg %p206
        $region70: #{tpu_custom_call.1} parent=63 // pred_check_branch
          %535 = sbr.rel (%p533) target = $region72
        $region71: #{tpu_custom_call.1} parent=63 // pred_region
          %s536 = sand.u32 %s191, 1
          %s537 = scalar_lea.sflag [#allocation10], %s536
          %s538 = sand.u32 %s191, 1
          %s539 = smul.addr %s538, 4
          %s540 = scalar_lea.vmem [#allocation9], %s539
          %541 = dma.done %s537, 64
        $region72: #{tpu_custom_call.1} parent=63 // pred_fallthru
          _
      $region64: #{tpu_custom_call.1} parent=5 // pred_fallthru
        _
    $region6: #{tpu_custom_call.1} parent=1 // loop_footer
      %s27 = sadd.s32 1, %s23
    $region7: #{tpu_custom_call.1} parent=1 // loop_footer_branch
      %22 = sbr.rel target = $region3
    $region8: #{tpu_custom_call.1} parent=1 // loop_exit
      _
    %542 = vsyncpa [#allocation3], 1
    %s543 = scalar_lea.sflag [#allocation3], 1
    %544 = vsyncpa %s543, 1
    %545 = vsyncpa [#allocation6], 1
    %546 = vsyncpa [#allocation4], 1
    %s547 = scalar_lea.sflag [#allocation4], 1
    %548 = vsyncpa %s547, 1
    %549 = vsyncpa [#allocation10], 1
    %s550 = scalar_lea.sflag [#allocation10], 1
    %551 = vsyncpa %s550, 1

</llo_original>
